<compile_context>
chip_gen: v5e
topology: v5e:2x2
jax: 0.10.0
libtpu: 0.0.40
codegen_flags: <defaults>
</compile_context>

<pallas_src>
import jax
import jax.numpy as jnp
from jax.experimental import pallas as pl
from jax.experimental.pallas import tpu as pltpu

_MIB = 1024 * 1024


def _round_up(a, b):
    return (a + b - 1) // b * b


def _cdiv(a, b):
    return (a + b - 1) // b


def _vmem_plan():
    """Return (vmem_limit_bytes, per-block byte target), generation aware."""
    try:
        cap = int(getattr(pltpu.get_tpu_info(), "vmem_capacity_bytes", 64 * _MIB))
    except Exception:
        cap = 64 * _MIB                      # assume the smallest (v7x: 64 MiB / core)
    limit = min(cap // 2, 64 * _MIB)         # 32 MiB on v7x, 64 MiB on v5e/v6e
    # Double-buffered in + out = 4 x block, plus headroom for the tiny
    # scale/shift blocks and compiler-internal scratch.
    block_target = max(2 * _MIB, (limit - 8 * _MIB) // 4)
    return limit, block_target


# ---------------------------------------------------------------- kernels ----

def _modulate_nchw_kernel(scale_ref, shift_ref, x_ref, o_ref):
    # scale/shift: (C, 1) f32 ; x/o: (BN, C, THW).  FMA in f32, cast once.
    x = x_ref[...].astype(jnp.float32)
    o_ref[...] = (x * scale_ref[...][None] + shift_ref[...][None]).astype(o_ref.dtype)


def _modulate_flat_kernel(scale_ref, shift_ref, x_ref, o_ref):
    # scale/shift: (1, TCHW) f32 ; x/o: (BN, TCHW).
    x = x_ref[...].astype(jnp.float32)
    o_ref[...] = (x * scale_ref[...] + shift_ref[...]).astype(o_ref.dtype)


# --------------------------------------------------------------- planners ----

def _plan_nchw(n, c, hw, itemsize, block_target):
    """Pick (BN, THW) for (N, C, HW) blocks, with padded-footprint accounting."""
    pack = max(8, 32 // itemsize)                  # sublane packing of the C axis
    c_pad = _round_up(c, pack)
    col_bytes = c_pad * 128 * itemsize             # one 128-lane column group / image
    img_bytes = c_pad * _round_up(hw, 128) * itemsize
    if img_bytes <= block_target:
        thw = hw                                   # full HW extent (rule-exempt)
        bn = max(1, min(n, block_target // img_bytes))
    else:
        bn = 1
        # 128-multiple tile; Pallas masks the partial tail tile.
        # TODO(synk): for pathologically large C (c_pad*512 > block_target) the
        # floor at 128 lanes can exceed the target; tile C as well if ever hit.
        thw = max(128, (block_target // max(col_bytes, 1)) * 128)
        if thw >= hw:
            thw = hw
    # Megacore: guarantee >= 2 parallel grid steps when data can be split.
    if _cdiv(n, bn) * _cdiv(hw, thw) < 2:
        if n >= 2:
            bn = _cdiv(n, 2)                       # leading dim: no (8,128) rule
        elif hw >= 256:
            thw = _round_up(_cdiv(hw, 2), 128)
    return bn, thw


def _plan_flat(n, chw, itemsize, block_target):
    """Pick (BN, TCHW) for (N, C*H*W) blocks (small-spatial path)."""
    pack = max(8, 32 // itemsize)                  # sublane packing of the N axis
    img_bytes = _round_up(chw, 128) * itemsize
    if _round_up(n, pack) * img_bytes <= block_target:
        bn, tchw = n, chw
    elif pack * img_bytes <= block_target:
        bn = min(n, (block_target // img_bytes) // pack * pack)   # multiple of 8
        tchw = chw
    else:
        bn = n if n <= pack else pack
        col_bytes = _round_up(bn, pack) * 128 * itemsize
        tchw = max(128, (block_target // max(col_bytes, 1)) * 128)
        if tchw >= chw:
            tchw = chw
    # Megacore split, respecting the (8,128) block rule (BN is second-to-last).
    if _cdiv(n, bn) * _cdiv(chw, tchw) < 2:
        if chw >= 256:
            tchw = _round_up(_cdiv(chw, 2), 128)
        elif n >= 2 * pack:
            bn = _round_up(_cdiv(n, 2), pack)
    return bn, tchw


# ---------------------------------------------------------------- wrapper ----

def adaptive_modulate(x, g_arch, wm_weight, wm_bias, bm_weight, bm_bias):
    """AdaptiveModulate forward.

    x:         (N, C, H, W)
    g_arch:    any shape with L elements (flattened like .view(1, -1))
    wm_weight: (C, L), wm_bias: (C,)   -- weight_mapping Linear params
    bm_weight: (C, L), bm_bias: (C,)   -- bias_mapping   Linear params
    """
    assert x.ndim == 4, "AdaptiveModulate expects a 4-D NCHW input"
    n, c, h, w = x.shape
    hw = h * w
    l = wm_weight.shape[-1]
    itemsize = jnp.dtype(x.dtype).itemsize

    # Hoisted mapping linears (f32): done once by XLA, kernel body is pure FMA.
    g = g_arch.reshape(1, l).astype(jnp.float32)
    scale = ((g @ wm_weight.astype(jnp.float32).T).reshape(c)
             + wm_bias.astype(jnp.float32).reshape(c) + 1.0)              # (C,)
    shift = ((g @ bm_weight.astype(jnp.float32).T).reshape(c)
             + bm_bias.astype(jnp.float32).reshape(c))                    # (C,)

    vmem_limit, block_target = _vmem_plan()
    cparams = pltpu.CompilerParams(
        dimension_semantics=("parallel", "parallel"),
        vmem_limit_bytes=vmem_limit,
    )

    if hw >= 128:
        # Lane-dense spatial path: (N, C, HW), C on sublanes.
        x3 = x.reshape(n, c, hw)
        bn, thw = _plan_nchw(n, c, hw, itemsize, block_target)
        grid = (_cdiv(n, bn), _cdiv(hw, thw))
        out3 = pl.pallas_call(
            _modulate_nchw_kernel,
            out_shape=jax.ShapeDtypeStruct((n, c, hw), x.dtype),
            grid_spec=pltpu.PrefetchScalarGridSpec(
                num_scalar_prefetch=0,
                grid=grid,
                in_specs=[
                    pl.BlockSpec((c, 1), lambda i, j: (0, 0)),        # scale
                    pl.BlockSpec((c, 1), lambda i, j: (0, 0)),        # shift
                    pl.BlockSpec((bn, c, thw), lambda i, j: (i, 0, j)),
                ],
                out_specs=pl.BlockSpec((bn, c, thw), lambda i, j: (i, 0, j)),
            ),
            compiler_params=cparams,
        )(scale.reshape(c, 1), shift.reshape(c, 1), x3)
        return out3.reshape(n, c, h, w)

    # Small-spatial path (H*W < 128): flatten each image to one lane-dense row
    # and modulate with a precomputed per-element scale/shift row.
    chw = c * hw
    x2 = x.reshape(n, chw)
    scale_row = jnp.repeat(scale, hw).reshape(1, chw)
    shift_row = jnp.repeat(shift, hw).reshape(1, chw)
    bn, tchw = _plan_flat(n, chw, itemsize, block_target)
    grid = (_cdiv(n, bn), _cdiv(chw, tchw))
    out2 = pl.pallas_call(
        _modulate_flat_kernel,
        out_shape=jax.ShapeDtypeStruct((n, chw), x.dtype),
        grid_spec=pltpu.PrefetchScalarGridSpec(
            num_scalar_prefetch=0,
            grid=grid,
            in_specs=[
                pl.BlockSpec((1, tchw), lambda i, j: (0, j)),         # scale row
                pl.BlockSpec((1, tchw), lambda i, j: (0, j)),         # shift row
                pl.BlockSpec((bn, tchw), lambda i, j: (i, j)),
            ],
            out_specs=pl.BlockSpec((bn, tchw), lambda i, j: (i, j)),
        ),
        compiler_params=cparams,
    )(scale_row, shift_row, x2)
    return out2.reshape(n, c, h, w)


def _reference(x, g_arch, wm_weight, wm_bias, bm_weight, bm_bias):
    g = g_arch.reshape(1, -1)
    weight = (g @ wm_weight.T).reshape(-1) + wm_bias + 1.0
    bias = (g @ bm_weight.T).reshape(-1) + bm_bias
    return x * weight.reshape(1, -1, 1, 1) + bias.reshape(1, -1, 1, 1)


if __name__ == "__main__":
    key = jax.random.PRNGKey(0)
    ks = jax.random.split(key, 8)
    L = 8
    lim = 1.0 / (L ** 0.5)

    def make_params(c, k3, k4, k5, k6):
        # torch.nn.Linear default init: U(-1/sqrt(in), 1/sqrt(in))
        wm_w = jax.random.uniform(k3, (c, L), minval=-lim, maxval=lim, dtype=jnp.float32)
        wm_b = jax.random.uniform(k4, (c,), minval=-lim, maxval=lim, dtype=jnp.float32)
        bm_w = jax.random.uniform(k5, (c, L), minval=-lim, maxval=lim, dtype=jnp.float32)
        bm_b = jax.random.uniform(k6, (c,), minval=-lim, maxval=lim, dtype=jnp.float32)
        return wm_w, wm_b, bm_w, bm_b

    g_arch = jax.random.normal(ks[0], (L,), dtype=jnp.float32)

    # Path 1: lane-dense spatial (H*W >= 128).
    N, C, H, W = 2, 4, 16, 16
    x = jax.random.normal(ks[1], (N, C, H, W), dtype=jnp.float32)
    p1 = make_params(C, ks[2], ks[3], ks[4], ks[5])
    y = adaptive_modulate(x, g_arch, *p1)
    jax.block_until_ready(y)
    ref = _reference(x, g_arch, *p1)
    assert y.shape == x.shape and y.dtype == x.dtype
    assert jnp.allclose(y, ref, atol=1e-5, rtol=1e-5)

    # Path 2: small spatial (H*W < 128) -> flattened lane-dense layout.
    N2, C2, H2, W2 = 2, 32, 4, 4
    x2 = jax.random.normal(ks[6], (N2, C2, H2, W2), dtype=jnp.float32)
    p2 = make_params(C2, ks[7], ks[2], ks[3], ks[4])
    y2 = adaptive_modulate(x2, g_arch, *p2)
    jax.block_until_ready(y2)
    ref2 = _reference(x2, g_arch, *p2)
    assert y2.shape == x2.shape and y2.dtype == x2.dtype
    assert jnp.allclose(y2, ref2, atol=1e-5, rtol=1e-5)

    print("KERNEL_OK")
</pallas_src>

<mosaic_0001>
module attributes {stable_mosaic.version = 11 : i64} {
  func.func @_modulate_nchw_kernel(%arg0: i32, %arg1: i32, %arg2: memref<4x1xf32, #tpu.memory_space<vmem>>, %arg3: memref<4x1xf32, #tpu.memory_space<vmem>>, %arg4: memref<1x4x256xf32, #tpu.memory_space<vmem>>, %arg5: memref<1x4x256xf32, #tpu.memory_space<vmem>>) attributes {dimension_semantics = [#tpu.dimension_semantics<parallel>, #tpu.dimension_semantics<parallel>], iteration_bounds = array<i64: 2, 1>, scalar_prefetch = 0 : i64, scratch_operands = 0 : i64, tpu.core_type = #tpu.core_type<tc>, window_params = [{pipeline_mode = #tpu.pipeline_mode<synchronous>, transform_indices = @transform_0, window_bounds = array<i64: 4, 1>}, {pipeline_mode = #tpu.pipeline_mode<synchronous>, transform_indices = @transform_1, window_bounds = array<i64: 4, 1>}, {transform_indices = @transform_2, window_bounds = array<i64: 1, 4, 256>}, {transform_indices = @transform_3, window_bounds = array<i64: 1, 4, 256>}]} {
    %c0 = arith.constant 0 : index
    %c0_0 = arith.constant 0 : index
    %c0_1 = arith.constant 0 : index
    %0 = vector.load %arg4[%c0, %c0_0, %c0_1] : memref<1x4x256xf32, #tpu.memory_space<vmem>>, vector<1x4x256xf32>
    %c0_2 = arith.constant 0 : index
    %c0_3 = arith.constant 0 : index
    %1 = vector.load %arg2[%c0_2, %c0_3] : memref<4x1xf32, #tpu.memory_space<vmem>>, vector<4x1xf32>
    %2 = vector.shape_cast %1 : vector<4x1xf32> to vector<1x4x1xf32>
    %3 = vector.broadcast %2 : vector<1x4x1xf32> to vector<1x4x256xf32>
    %4 = arith.mulf %0, %3 : vector<1x4x256xf32>
    %c0_4 = arith.constant 0 : index
    %c0_5 = arith.constant 0 : index
    %5 = vector.load %arg3[%c0_4, %c0_5] : memref<4x1xf32, #tpu.memory_space<vmem>>, vector<4x1xf32>
    %6 = vector.shape_cast %5 : vector<4x1xf32> to vector<1x4x1xf32>
    %7 = vector.broadcast %6 : vector<1x4x1xf32> to vector<1x4x256xf32>
    %8 = arith.addf %4, %7 : vector<1x4x256xf32>
    %c0_6 = arith.constant 0 : index
    %c0_7 = arith.constant 0 : index
    %c0_8 = arith.constant 0 : index
    %9 = vector.load %arg5[%c0_6, %c0_7, %c0_8] : memref<1x4x256xf32, #tpu.memory_space<vmem>>, vector<1x4x256xf32>
    tpu.vector_store %arg5[%c0_6, %c0_7, %c0_8], %8 {strides = array<i32>} : memref<1x4x256xf32, #tpu.memory_space<vmem>>, vector<1x4x256xf32>,
    return
  }
  func.func @transform_0(%arg0: i32, %arg1: i32) -> (i32, i32) {
    %c0_i32 = arith.constant 0 : i32
    %c0_i32_0 = arith.constant 0 : i32
    %c0_i32_1 = arith.constant 0 : i32
    return %c0_i32, %c0_i32_0 : i32, i32
  }
  func.func @transform_1(%arg0: i32, %arg1: i32) -> (i32, i32) {
    %c0_i32 = arith.constant 0 : i32
    %c0_i32_0 = arith.constant 0 : i32
    %c0_i32_1 = arith.constant 0 : i32
    return %c0_i32, %c0_i32_0 : i32, i32
  }
  func.func @transform_2(%arg0: i32, %arg1: i32) -> (i32, i32, i32) {
    %c0_i32 = arith.constant 0 : i32
    %c0_i32_0 = arith.constant 0 : i32
    return %arg0, %c0_i32, %arg1 : i32, i32, i32
  }
  func.func @transform_3(%arg0: i32, %arg1: i32) -> (i32, i32, i32) {
    %c0_i32 = arith.constant 0 : i32
    %c0_i32_0 = arith.constant 0 : i32
    return %arg0, %c0_i32, %arg1 : i32, i32, i32
  }
}

</mosaic_0001>

<llo_original>
// kernel: tpu_custom_call.1
$region0: #{tpu_custom_call.1}
  #allocation0 [shape = 'u32[]', space=smem, size = 0x4, offset = 0x4, fixed_abs, tag = 'smem constant byte address 0x4 - core index']
  #allocation1 [shape = 'u32[72,128]{1,0:T(1,128)}', space=vmem, size = 0x9000, scoped, tag = 'internal scratch']
  %s0 = inlined_call_operand.vmem [shape: f32[4,1], index: 0, kind: input, shape index: {}]
  %s1 = inlined_call_operand.vmem [shape: f32[4,1], index: 1, kind: input, shape index: {}]
  %s2 = inlined_call_operand.hbm [shape: f32[2,4,256], index: 2, kind: input, shape index: {}]
  %s3 = inlined_call_operand.hbm [shape: f32[2,4,256], index: 3, kind: output, shape index: {}]
  %s4 = sld [smem:[#allocation0]]
  $region49: #{tpu_custom_call.1} parent=0
    _
  %s6 = ssub.s32 1, %s4
  %s7 = scalar_select 0, %s6, %s4
  $region1: #{tpu_custom_call.1} parent=0
    #allocation2 [shape = 'u8[8192]{0}', space=vmem, size = 0x2000, scoped, tag = 'input window, operand 2']
    #allocation3 [shape = 's32[2]{0}', space=sflag, size = 0x8, scoped, tag = 'scoped memory for tpu_custom_call.1']
    #allocation4 [shape = 's32[2]{0}', space=sflag, size = 0x8, scoped, tag = 'scoped memory for tpu_custom_call.1']
    #allocation5 [shape = 'u8[8192]{0}', space=vmem, size = 0x2000, scoped, tag = 'output window, operand 0']
    %8 = vsyncpa [#allocation3], 0
    %s9 = scalar_lea.sflag [#allocation3], 1
    %10 = vsyncpa %s9, 0
    %11 = vsyncpa [#allocation4], 0
    %s12 = scalar_lea.sflag [#allocation4], 1
    %13 = vsyncpa %s12, 0
    loop: start=0, step=1, limit=4
    $region2: #{tpu_custom_call.1} parent=1 // loop_pre_header
      _
    $region3: #{tpu_custom_call.1} parent=1 // loop_header
      %s15 = sphi 0, %s19
      %p16 = scmp.ge.s32.totalorder %s15, 4
      %s22 = sphi 0, %s34
      %s23 = sphi 0, %s30
      %s24 = sphi 0, %s22
      %s25 = sphi 0, %s23
      %s26 = sphi 0, %s24
      %s27 = sphi 0, %s25
      %s35 = sphi 0, %s35
      %s37 = sphi 0, %s35
      %s38 = sphi 0, %s37
      %s52 = sphi 0, %s38
      %s56 = sphi 0, %s56
      %s58 = sphi 0, %s56
      %s59 = sphi 0, %s58
      %s73 = sphi 0, %s59
      %s81 = sphi 0, %s83
      %s84 = sphi 0, %s81
      %s85 = sphi 0, %s84
      %s101 = sphi 0, %s85
      %s109 = sphi 0, %s111
      %s112 = sphi 0, %s109
      %s113 = sphi 0, %s112
      %s129 = sphi 0, %s113
    $region4: #{tpu_custom_call.1} parent=1 // loop_header_branch
      %18 = sbr.rel (%p16) target = $region8
    $region5: #{tpu_custom_call.1} parent=1 // loop_body
      %s20 = ssub.s32 %s15, 1
      %s21 = ssub.s32 %s15, 2
      %s28 = sadd.s32 1, %s23
      %p29 = scmp.ge.s32.totalorder %s28, 1
      %s30 = scalar_select %p29, 0, %s28
      %s31 = sadd.s32 1, %s22
      %s32 = scalar_select %p29, %s31, %s22
      %p33 = scmp.ge.s32.totalorder %s32, 2
      %s34 = scalar_select %p33, 0, %s32
      %s36 = sadd.s32 %s35, 1
      %p39 = scmp.eq.s32.totalorder %s15, 1
      %p40 = scmp.ne.s32.totalorder %s35, %s37
      %p41 = scmp.eq.s32.totalorder %s15, 0
      %p42 = por %p40, %p41
      %p43 = scmp.ne.s32.totalorder %s35, %s37
      %p44 = scmp.eq.s32.totalorder %s20, 1
      %p45 = por %p43, %p44
      %p46 = scmp.ne.s32.totalorder %s37, %s38
      %p47 = scmp.eq.s32.totalorder %s20, 0
      %p48 = por %p46, %p47
      %p49 = scmp.ne.s32.totalorder %s37, %s38
      %p50 = scmp.eq.s32.totalorder %s21, 1
      %p51 = por %p49, %p50
      %p53 = scmp.ne.s32.totalorder %s38, %s52
      %p54 = scmp.eq.s32.totalorder %s21, 0
      %p55 = por %p53, %p54
      %s57 = sadd.s32 %s56, 1
      %p60 = scmp.eq.s32.totalorder %s15, 1
      %p61 = scmp.ne.s32.totalorder %s56, %s58
      %p62 = scmp.eq.s32.totalorder %s15, 0
      %p63 = por %p61, %p62
      %p64 = scmp.ne.s32.totalorder %s56, %s58
      %p65 = scmp.eq.s32.totalorder %s20, 1
      %p66 = por %p64, %p65
      %p67 = scmp.ne.s32.totalorder %s58, %s59
      %p68 = scmp.eq.s32.totalorder %s20, 0
      %p69 = por %p67, %p68
      %p70 = scmp.ne.s32.totalorder %s58, %s59
      %p71 = scmp.eq.s32.totalorder %s21, 1
      %p72 = por %p70, %p71
      %p74 = scmp.ne.s32.totalorder %s59, %s73
      %p75 = scmp.eq.s32.totalorder %s21, 0
      %p76 = por %p74, %p75
      %s77 = ssub.s32 %s22, %s34
      %s78 = ssub.s32 %s23, %s30
      %s79 = sor.u32 %s77, %s78
      %p80 = scmp.eq.s32.totalorder %s79, 0
      %s82 = sadd.s32 %s81, 1
      %s83 = scalar_select %p80, %s81, %s82
      %p86 = pneg %p80
      %p87 = scmp.eq.s32.totalorder %s15, 1
      %p88 = por %p86, %p87
      %p89 = scmp.ne.s32.totalorder %s81, %s84
      %p90 = scmp.eq.s32.totalorder %s15, 0
      %p91 = por %p89, %p90
      %p92 = scmp.ne.s32.totalorder %s81, %s84
      %p93 = scmp.eq.s32.totalorder %s20, 1
      %p94 = por %p92, %p93
      %p95 = scmp.ne.s32.totalorder %s84, %s85
      %p96 = scmp.eq.s32.totalorder %s20, 0
      %p97 = por %p95, %p96
      %p98 = scmp.ne.s32.totalorder %s84, %s85
      %p99 = scmp.eq.s32.totalorder %s21, 1
      %p100 = por %p98, %p99
      %p102 = scmp.ne.s32.totalorder %s85, %s101
      %p103 = scmp.eq.s32.totalorder %s21, 0
      %p104 = por %p102, %p103
      %s105 = ssub.s32 %s22, %s34
      %s106 = ssub.s32 %s23, %s30
      %s107 = sor.u32 %s105, %s106
      %p108 = scmp.eq.s32.totalorder %s107, 0
      %s110 = sadd.s32 %s109, 1
      %s111 = scalar_select %p108, %s109, %s110
      %p114 = pneg %p108
      %p115 = scmp.eq.s32.totalorder %s15, 1
      %p116 = por %p114, %p115
      %p117 = scmp.ne.s32.totalorder %s109, %s112
      %p118 = scmp.eq.s32.totalorder %s15, 0
      %p119 = por %p117, %p118
      %p120 = scmp.ne.s32.totalorder %s109, %s112
      %p121 = scmp.eq.s32.totalorder %s20, 1
      %p122 = por %p120, %p121
      %p123 = scmp.ne.s32.totalorder %s112, %s113
      %p124 = scmp.eq.s32.totalorder %s20, 0
      %p125 = por %p123, %p124
      %p126 = scmp.ne.s32.totalorder %s112, %s113
      %p127 = scmp.eq.s32.totalorder %s21, 1
      %p128 = por %p126, %p127
      %p130 = scmp.ne.s32.totalorder %s113, %s129
      %p131 = scmp.eq.s32.totalorder %s21, 0
      %p132 = por %p130, %p131
      %p133 = scmp.le.s32.totalorder 1, %s15
      %p134 = scmp.lt.s32.totalorder %s15, 3
      %p135 = pnand %p133, %p134
      %p136 = pneg %p135
      // Predicated region
      $region9: #{tpu_custom_call.1} parent=5 // pred_check
        _
      $region10: #{tpu_custom_call.1} parent=5 // pred_check_branch
        %138 = sbr.rel (%p135) target = $region12
      $region11: #{tpu_custom_call.1} parent=5 // pred_region
        %s139 = ssub.s32 %s15, 1
        // Predicated region
        $region13: #{tpu_custom_call.1} parent=11 // pred_check
          %p140 = pneg %p48
        $region14: #{tpu_custom_call.1} parent=11 // pred_check_branch
          %142 = sbr.rel (%p140) target = $region16
        $region15: #{tpu_custom_call.1} parent=11 // pred_region
          _
        $region16: #{tpu_custom_call.1} parent=11 // pred_fallthru
          _
        // Predicated region
        $region17: #{tpu_custom_call.1} parent=11 // pred_check
          %p143 = pneg %p69
        $region18: #{tpu_custom_call.1} parent=11 // pred_check_branch
          %145 = sbr.rel (%p143) target = $region20
        $region19: #{tpu_custom_call.1} parent=11 // pred_region
          _
        $region20: #{tpu_custom_call.1} parent=11 // pred_fallthru
          _
      $region12: #{tpu_custom_call.1} parent=5 // pred_fallthru
        _
      %p146 = scmp.lt.s32.totalorder %s15, 2
      // Predicated region
      $region21: #{tpu_custom_call.1} parent=5 // pred_check
        %p147 = pneg %p146
      $region22: #{tpu_custom_call.1} parent=5 // pred_check_branch
        %149 = sbr.rel (%p147) target = $region24
      $region23: #{tpu_custom_call.1} parent=5 // pred_region
        // Predicated region
        $region25: #{tpu_custom_call.1} parent=23 // pred_check
          %p150 = pneg %p91
        $region26: #{tpu_custom_call.1} parent=23 // pred_check_branch
          %152 = sbr.rel (%p150) target = $region28
        $region27: #{tpu_custom_call.1} parent=23 // pred_region
          %s153 = sand.u32 %s81, 1
          %s154 = scalar_lea.sflag [#allocation3], %s153
          %s155 = sand.u32 %s81, 1
          %s156 = smul.addr %s155, 8
          %s157 = scalar_lea.vmem [#allocation2], %s156
          %s158 = smul.u32 2, %s23
          %160 = vsyncadd %s154, 0
          %s161 = smul.addr %s22, 2
          %s162 = sadd.s32 %s158, %s161
          %s163 = smul.addr %s162, 4
          %s164 = scalar_lea.hbm %s2, %s163
          %s166 = sshll.u32 %s164, 4
          %s167 = int_to_ptr.hbm [resolvable:$true] %s166
          %s168 = sshll.u32 %s157, 4
          %s169 = int_to_ptr.vmem [resolvable:$true] %s168
          %171 = dma.hbm_to_vmem [thread:$0]  %s167, 128, %s169, %s154
        $region28: #{tpu_custom_call.1} parent=23 // pred_fallthru
          _
      $region24: #{tpu_custom_call.1} parent=5 // pred_fallthru
        _
      %p172 = scmp.le.s32.totalorder 1, %s15
      %p173 = scmp.lt.s32.totalorder %s15, 3
      %p174 = pnand %p172, %p173
      %p175 = pneg %p174
      // Predicated region
      $region29: #{tpu_custom_call.1} parent=5 // pred_check
        _
      $region30: #{tpu_custom_call.1} parent=5 // pred_check_branch
        %177 = sbr.rel (%p174) target = $region32
      $region31: #{tpu_custom_call.1} parent=5 // pred_region
        %s178 = ssub.s32 %s15, 1
        %s179 = sand.u32 %s84, 1
        %s180 = scalar_lea.sflag [#allocation3], %s179
        %s181 = sand.u32 %s84, 1
        %s182 = smul.addr %s181, 8
        %s183 = scalar_lea.vmem [#allocation2], %s182
        // Predicated region
        $region33: #{tpu_custom_call.1} parent=31 // pred_check
          %p184 = pneg %p97
        $region34: #{tpu_custom_call.1} parent=31 // pred_check_branch
          %186 = sbr.rel (%p184) target = $region36
        $region35: #{tpu_custom_call.1} parent=31 // pred_region
          %188 = dma.done %s180, 128
        $region36: #{tpu_custom_call.1} parent=31 // pred_fallthru
          _
        %p189 = pneg %p48
        %p190 = pneg %p45
        %p191 = pneg %p69
        %p192 = pneg %p66
        %s193 = sand.u32 %s84, 1
        %s194 = scalar_lea.sflag [#allocation3], %s193
        %s195 = sand.u32 %s84, 1
        %s196 = smul.addr %s195, 8
        %s197 = scalar_lea.vmem [#allocation2], %s196
        %p198 = pneg %p97
        %p199 = pneg %p94
        %p200 = pneg %p125
        %p201 = pneg %p122
        %s202 = sand.u32 %s112, 1
        %s203 = scalar_lea.sflag [#allocation4], %s202
        %s204 = sand.u32 %s112, 1
        %s205 = smul.addr %s204, 8
        %s206 = scalar_lea.vmem [#allocation5], %s205
        %s207 = smul.u32 2, %s25
        %s208 = smul.u32 2, %s25
        %v209 = vld [vmem:[%s183] sm:$0xff]
        %v210 = vld [vmem:[%s0] sm:$0xf]
        %212 = vset.pattern.permute.xlu0 0
        %213 = vperm.xlu0 %212, %v210
        %v214 = vpop.permute.xlu0 %213
        %v216 = vunpack.c.l.s4 839922192
        %v217 = vunpack.c.0.s8 %v216
        %v218 = vperm.slane %v214, %v217
        %v220 = vmul.f32 %v209, %v218
        %v221 = vld [vmem:[%s1] sm:$0xf]
        %223 = vset.pattern.permute.xlu0 0
        %224 = vperm.xlu0 %223, %v221
        %v225 = vpop.permute.xlu0 %224
        %v227 = vunpack.c.l.s4 839922192
        %v228 = vunpack.c.0.s8 %v227
        %v229 = vperm.slane %v225, %v228
        %v231 = vadd.f32 %v220, %v229
        %232 = vst [vmem:[%s206] sm:$0xff] %v231
        %s233 = sand.u32 %s112, 1
        %s234 = scalar_lea.sflag [#allocation4], %s233
        %s235 = sand.u32 %s112, 1
        %s236 = smul.addr %s235, 8
        %s237 = scalar_lea.vmem [#allocation5], %s236
        // Predicated region
        $region37: #{tpu_custom_call.1} parent=31 // pred_check
          %p238 = pneg %p122
        $region38: #{tpu_custom_call.1} parent=31 // pred_check_branch
          %240 = sbr.rel (%p238) target = $region40
        $region39: #{tpu_custom_call.1} parent=31 // pred_region
          %s241 = smul.u32 2, %s25
          %243 = vsyncadd %s234, 0
          %s244 = smul.addr %s24, 2
          %s245 = sadd.s32 %s241, %s244
          %s246 = smul.addr %s245, 4
          %s247 = scalar_lea.hbm %s3, %s246
          %s249 = sshll.u32 %s237, 4
          %s250 = int_to_ptr.vmem [resolvable:$true] %s249
          %s251 = sshll.u32 %s247, 4
          %s252 = int_to_ptr.hbm [resolvable:$true] %s251
          %254 = dma.vmem_to_hbm [thread:$0]  %s250, 128, %s252, %s234
        $region40: #{tpu_custom_call.1} parent=31 // pred_fallthru
          _
      $region32: #{tpu_custom_call.1} parent=5 // pred_fallthru
        _
      %p255 = scmp.le.s32.totalorder 2, %s15
      // Predicated region
      $region41: #{tpu_custom_call.1} parent=5 // pred_check
        %p256 = pneg %p255
      $region42: #{tpu_custom_call.1} parent=5 // pred_check_branch
        %258 = sbr.rel (%p256) target = $region44
      $region43: #{tpu_custom_call.1} parent=5 // pred_region
        %s259 = ssub.s32 %s15, 2
        // Predicated region
        $region45: #{tpu_custom_call.1} parent=43 // pred_check
          %p260 = pneg %p128
        $region46: #{tpu_custom_call.1} parent=43 // pred_check_branch
          %262 = sbr.rel (%p260) target = $region48
        $region47: #{tpu_custom_call.1} parent=43 // pred_region
          %s263 = sand.u32 %s113, 1
          %s264 = scalar_lea.sflag [#allocation4], %s263
          %s265 = sand.u32 %s113, 1
          %s266 = smul.addr %s265, 8
          %s267 = scalar_lea.vmem [#allocation5], %s266
          %269 = dma.done %s264, 128
        $region48: #{tpu_custom_call.1} parent=43 // pred_fallthru
          _
      $region44: #{tpu_custom_call.1} parent=5 // pred_fallthru
        _
    $region6: #{tpu_custom_call.1} parent=1 // loop_footer
      %s19 = sadd.s32 1, %s15
    $region7: #{tpu_custom_call.1} parent=1 // loop_footer_branch
      %14 = sbr.rel target = $region3
    $region8: #{tpu_custom_call.1} parent=1 // loop_exit
      _
    %270 = vsyncpa [#allocation3], 1
    %s271 = scalar_lea.sflag [#allocation3], 1
    %272 = vsyncpa %s271, 1
    %273 = vsyncpa [#allocation4], 1
    %s274 = scalar_lea.sflag [#allocation4], 1
    %275 = vsyncpa %s274, 1

</llo_original>
